<compile_context>
chip_gen: v6e
topology: v6e:2x2x1
jax: 0.10.0
libtpu: 0.0.40
codegen_flags: <defaults>
</compile_context>

<pallas_src>
import jax
import jax.numpy as jnp
from jax import lax
from jax.experimental import pallas as pl
from jax.experimental.pallas import tpu as pltpu


def _round_up(x, m):
    return (x + m - 1) // m * m


def _vmem_budget_bytes():
    """~75% of physical per-core VMEM; falls back to the v7x 64 MiB worst case."""
    cap = None
    try:
        cap = getattr(pltpu.get_tpu_info(), "vmem_capacity_bytes", None)
    except Exception:
        cap = None
    if not cap:
        cap = 64 * 2 ** 20
    return int(0.75 * cap)


def _num_tensorcores():
    """Best-effort TensorCore count per chip (v7x / megacore -> 2); safe fallback 1."""
    try:
        d = jax.devices()[0]
        for attr in ("num_cores", "core_count"):
            v = getattr(d, attr, None)
            if isinstance(v, int) and v > 0:
                return v
    except Exception:
        pass
    return 1


def _lane_align(hidden_size):
    """MXU-friendly lane padding: 256 on v6e/v7x when H > 128, else 128."""
    if hidden_size <= 128:
        return 128
    kind = ""
    try:
        kind = str(getattr(jax.devices()[0], "device_kind", "")).lower()
    except Exception:
        pass
    return 256 if ("v6" in kind or "v7" in kind) else 128


def _ctrnn_recurrence_kernel(alpha, t_block, n_chains, half, unroll):
    """Grid-step body: advances the hidden state over t_block timesteps.

    Refs:
      xp_ref : (t_block, Bb, Hp)  precomputed input projection (+ fused biases)
      wh_ref : (Hp, Hp)           recurrent weight, (in, out) layout, VMEM-resident
      rnn_ref: (t_block, Bb, Hp)  hidden-state trajectory output (compute dtype)
      h_scr  : (Bb, Hp)           persistent hidden state (float32)
    """

    def kernel(xp_ref, wh_ref, rnn_ref, h_scr):
        # Correctness of the persistent h_scr requires the TIME axis to be the
        # innermost (sequential, "arbitrary") grid dimension and batch the
        # outer "parallel" one.  Do not reorder the grid.
        t = pl.program_id(1)

        @pl.when(t == 0)
        def _():
            h_scr[...] = jnp.zeros_like(h_scr)       # init_hidden -> zeros

        wh = wh_ref[...]                             # (Hp, Hp), compute dtype, resident
        # TODO(synk): if a bundle dump shows jnp.dot re-pushing the full Wh
        # weight every timestep, switch to explicit MXU driving
        # (pltpu.matmul_push_rhs once per grid step + matmul_acc_lhs / matmul_pop
        # per timestep) to hold the RHS across the time block.

        if n_chains == 1:
            def step(i, h):
                # pre = (x_t@Win.T + b_in + b_h)  +  h @ Wh.T   (Wh pre-transposed)
                pre = xp_ref[i].astype(jnp.float32) + jnp.dot(
                    h.astype(wh.dtype), wh, preferred_element_type=jnp.float32)
                h = h + alpha * (jnp.maximum(pre, 0.0) - h)   # leaky ReLU update, fp32
                rnn_ref[i] = h.astype(rnn_ref.dtype)
                return h

            h_scr[...] = lax.fori_loop(0, t_block, step, h_scr[...], unroll=unroll)
        else:
            # Two independent hidden-state chains (batch halves): overlaps one
            # chain's VPU/relu/update work with the other chain's MXU matmul
            # when the matmul M is small (latency-bound recurrence).
            def step(i, carry):
                h_a, h_b = carry
                xt = xp_ref[i].astype(jnp.float32)
                pre_a = xt[:half] + jnp.dot(h_a.astype(wh.dtype), wh,
                                            preferred_element_type=jnp.float32)
                pre_b = xt[half:] + jnp.dot(h_b.astype(wh.dtype), wh,
                                            preferred_element_type=jnp.float32)
                h_a = h_a + alpha * (jnp.maximum(pre_a, 0.0) - h_a)
                h_b = h_b + alpha * (jnp.maximum(pre_b, 0.0) - h_b)
                rnn_ref[i] = jnp.concatenate([h_a, h_b], axis=0).astype(rnn_ref.dtype)
                return (h_a, h_b)

            h0 = h_scr[...]
            h_a, h_b = lax.fori_loop(0, t_block, step, (h0[:half], h0[half:]),
                                     unroll=unroll)
            h_scr[...] = jnp.concatenate([h_a, h_b], axis=0)

    return kernel


def rnn_net_forward(x, params, *, dt=10, tau=100.0,
                    compute_dtype=jnp.bfloat16, time_block=32, batch_block=None):
    """x: (S, B, I) float32. params: PyTorch-layout linear weights/biases."""
    S, B, _ = x.shape
    H = params["w_h2h"].shape[0]
    O = params["w_fc"].shape[0]
    alpha = 1.0 if dt is None else dt / tau

    itemsize = jnp.dtype(compute_dtype).itemsize
    row_align = 16 if itemsize == 2 else 8          # bf16 packs 16 rows per vreg
    Hp = _round_up(H, _lane_align(H))               # lane-dense hidden
    Bp = _round_up(B, row_align)                    # sublane/packing-aligned batch

    # Batch blocking: split in half on multi-TensorCore chips (v7x) so the
    # "parallel" grid axis has extent >= 2; keep unsplit on 1-TC chips.
    if batch_block is None:
        Bb = Bp
        if _num_tensorcores() > 1 and Bp // 2 >= row_align and (Bp // 2) % row_align == 0:
            Bb = Bp // 2
    else:
        Bb = batch_block
    assert Bp % Bb == 0 and Bb % row_align == 0

    traj_dtype = compute_dtype                      # bf16 trajectory halves writeback
    o_isz = jnp.dtype(traj_dtype).itemsize

    # Time blocking (amortize ~0.35 us grid-step overhead and DMA latency),
    # auto-shrunk until residency + tile footprint fits the VMEM budget.
    t_block = max(1, min(time_block, S))

    def _need(tb):
        return (Hp * Hp * itemsize                  # resident Wh (single buffer)
                + 2 * tb * Bb * Hp * itemsize       # double-buffered xproj tile
                + 2 * tb * Bb * Hp * o_isz          # double-buffered trajectory tile
                + Bb * Hp * 4)                      # fp32 hidden scratch

    budget = _vmem_budget_bytes()
    while t_block > 1 and _need(t_block) > budget:
        t_block //= 2
    # TODO(synk): tile Wh columns with an inner emit_pipeline when Hp*Hp*itemsize
    # alone exceeds the VMEM budget (very large H on v7x).
    need = _need(t_block)
    vmem_limit = max(16 * 2 ** 20, min(int(1.5 * need), budget))
    vmem_limit = max(vmem_limit, int(1.1 * need))

    Sp = _round_up(S, t_block)

    # Two-chain interleave only when latency-bound and the halves stay dense.
    n_chains = 2 if (Bb <= 64 and Bb % (2 * row_align) == 0) else 1
    half = Bb // 2

    # Unroll gated on the live fp32 carry size (avoid vreg spills).
    carry_bytes = Bb * Hp * 4
    if carry_bytes <= 64 * 1024:
        unroll = min(t_block, 8)
    elif carry_bytes <= 128 * 1024:
        unroll = min(t_block, 4)
    else:
        unroll = min(t_block, 2)

    w_in = params["w_in"]                           # (H, I)
    w_h = params["w_h2h"]                           # (H, H)
    w_fc = params["w_fc"]                           # (O, H)
    b_comb = params["b_in"] + params["b_h2h"]       # fused bias (H,)

    # Hoisted input projection: one large GEMM outside the serial recurrence,
    # biases fused, streamed to the kernel in compute_dtype (bf16 by default).
    xproj = jnp.einsum("sbi,hi->sbh", x.astype(jnp.float32), w_in,
                       preferred_element_type=jnp.float32) + b_comb
    xproj = jnp.pad(xproj, ((0, Sp - S), (0, Bp - B), (0, Hp - H)))
    xproj = xproj.astype(compute_dtype)

    # Pre-transposed, zero-padded recurrent weight in (in, out) layout.
    wh_t = jnp.zeros((Hp, Hp), jnp.float32).at[:H, :H].set(w_h.T).astype(compute_dtype)

    rnn_padded = pl.pallas_call(
        _ctrnn_recurrence_kernel(alpha, t_block, n_chains, half, unroll),
        out_shape=jax.ShapeDtypeStruct((Sp, Bp, Hp), traj_dtype),
        grid_spec=pltpu.PrefetchScalarGridSpec(
            num_scalar_prefetch=0,
            grid=(Bp // Bb, Sp // t_block),               # (batch parallel, time serial)
            in_specs=[
                pl.BlockSpec((t_block, Bb, Hp), lambda b, t: (t, b, 0)),   # xproj tiles
                pl.BlockSpec(memory_space=pltpu.MemorySpace.VMEM),         # Wh resident
            ],
            out_specs=pl.BlockSpec((t_block, Bb, Hp), lambda b, t: (t, b, 0)),
            scratch_shapes=[pltpu.VMEM((Bb, Hp), jnp.float32)],            # hidden state
        ),
        compiler_params=pltpu.CompilerParams(
            dimension_semantics=("parallel", "arbitrary"),  # time MUST stay sequential
            vmem_limit_bytes=int(vmem_limit)),
    )(xproj, wh_t)

    rnn_out = rnn_padded[:S, :B, :H]

    # Hoisted fc readout: one lane-dense GEMM off the serial critical path;
    # MXU fed in compute_dtype, fp32 accumulation.
    out = jnp.einsum("sbh,oh->sbo", rnn_out, w_fc.astype(rnn_out.dtype),
                     preferred_element_type=jnp.float32) + params["b_fc"]
    assert out.shape == (S, B, O)
    return out, rnn_out.astype(jnp.float32)


def init_params(key, input_size, hidden_size, output_size):
    """Deterministic PyTorch-style uniform(-1/sqrt(fan_in), 1/sqrt(fan_in))."""
    ks = jax.random.split(key, 6)

    def lin(kw, kb, out_f, in_f):
        bound = 1.0 / jnp.sqrt(in_f)
        w = jax.random.uniform(kw, (out_f, in_f), jnp.float32, -bound, bound)
        b = jax.random.uniform(kb, (out_f,), jnp.float32, -bound, bound)
        return w, b

    w_in, b_in = lin(ks[0], ks[1], hidden_size, input_size)
    w_h, b_h = lin(ks[2], ks[3], hidden_size, hidden_size)
    w_fc, b_fc = lin(ks[4], ks[5], output_size, hidden_size)
    return {"w_in": w_in, "b_in": b_in,
            "w_h2h": w_h, "b_h2h": b_h,
            "w_fc": w_fc, "b_fc": b_fc}


def reference_forward(x, params, *, dt=10, tau=100.0):
    """Pure-JAX reference mirroring the PyTorch module (sanity check)."""
    alpha = 1.0 if dt is None else dt / tau
    _, B, _ = x.shape
    H = params["w_h2h"].shape[0]
    h = jnp.zeros((B, H), jnp.float32)

    def step(h, x_t):
        pre = (x_t @ params["w_in"].T + params["b_in"]
               + h @ params["w_h2h"].T + params["b_h2h"])
        h_new = jnp.maximum(pre, 0.0)
        h = h * (1.0 - alpha) + h_new * alpha
        return h, h

    _, rnn_out = jax.lax.scan(step, h, x)
    out = rnn_out @ params["w_fc"].T + params["b_fc"]
    return out, rnn_out


if __name__ == "__main__":
    seq_len, batch, input_size, hidden_size, output_size = 8, 2, 4, 32, 4

    key = jax.random.PRNGKey(0)
    kx, kp = jax.random.split(key)
    x = jax.random.normal(kx, (seq_len, batch, input_size), jnp.float32)
    params = init_params(kp, input_size, hidden_size, output_size)

    out_ref, rnn_ref = reference_forward(x, params)

    # fp32 MXU feed + fp32 trajectory: tight check against the reference.
    out32, rnn32 = jax.block_until_ready(
        rnn_net_forward(x, params, compute_dtype=jnp.float32))
    assert out32.shape == (seq_len, batch, output_size)
    assert rnn32.shape == (seq_len, batch, hidden_size)
    assert jnp.allclose(out32, out_ref, atol=1e-4)
    assert jnp.allclose(rnn32, rnn_ref, atol=1e-4)

    # Default path: bf16 MXU feed + bf16 trajectory, fp32 state/accumulation.
    out_bf, rnn_bf = jax.block_until_ready(rnn_net_forward(x, params))
    assert jnp.allclose(out_bf, out_ref, atol=5e-2)
    assert jnp.allclose(rnn_bf, rnn_ref, atol=5e-2)

    # Larger batch exercises the two-chain interleave (and the v7x batch split).
    xb = jax.random.normal(jax.random.PRNGKey(1), (seq_len, 64, input_size),
                           jnp.float32)
    out_ref_b, rnn_ref_b = reference_forward(xb, params)
    out_b, rnn_b = jax.block_until_ready(rnn_net_forward(xb, params))
    assert jnp.allclose(out_b, out_ref_b, atol=5e-2)
    assert jnp.allclose(rnn_b, rnn_ref_b, atol=5e-2)

    print("KERNEL_OK")
</pallas_src>

<mosaic_0001>
module attributes {stable_mosaic.version = 11 : i64} {
  func.func @kernel(%arg0: i32, %arg1: i32, %arg2: memref<8x8x128xf32, #tpu.memory_space<vmem>>, %arg3: memref<128x128xf32, #tpu.memory_space<vmem>>, %arg4: memref<8x8x128xf32, #tpu.memory_space<vmem>>, %arg5: memref<8x128xf32, #tpu.memory_space<vmem>>) attributes {dimension_semantics = [#tpu.dimension_semantics<parallel>, #tpu.dimension_semantics<arbitrary>], iteration_bounds = array<i64: 1, 1>, scalar_prefetch = 0 : i64, scratch_operands = 1 : i64, tpu.core_type = #tpu.core_type<tc>, window_params = [{transform_indices = @transform_0, window_bounds = array<i64: 8, 8, 128>}, {pipeline_mode = #tpu.pipeline_mode<synchronous>, transform_indices = @transform_1, window_bounds = array<i64: 128, 128>}, {transform_indices = @transform_2, window_bounds = array<i64: 8, 8, 128>}]} {
    %c0_i32 = arith.constant 0 : i32
    %0 = arith.cmpi eq, %arg1, %c0_i32 : i32
    %1 = arith.extui %0 : i1 to i32
    %c0_i32_0 = arith.constant 0 : i32
    %2 = arith.cmpi ne, %1, %c0_i32_0 : i32
    scf.if %2 {
      %cst_62 = arith.constant 0.000000e+00 : f32
      %126 = vector.broadcast %cst_62 : f32 to vector<8x128xf32>
      %c0_63 = arith.constant 0 : index
      %c0_64 = arith.constant 0 : index
      %127 = vector.load %arg5[%c0_63, %c0_64] : memref<8x128xf32, #tpu.memory_space<vmem>>, vector<8x128xf32>
      tpu.vector_store %arg5[%c0_63, %c0_64], %126 {strides = array<i32>} : memref<8x128xf32, #tpu.memory_space<vmem>>, vector<8x128xf32>,
    } else {
    }
    %c0 = arith.constant 0 : index
    %c0_1 = arith.constant 0 : index
    %3 = vector.load %arg3[%c0, %c0_1] : memref<128x128xf32, #tpu.memory_space<vmem>>, vector<128x128xf32>
    %c0_2 = arith.constant 0 : index
    %c0_3 = arith.constant 0 : index
    %4 = vector.load %arg5[%c0_2, %c0_3] : memref<8x128xf32, #tpu.memory_space<vmem>>, vector<8x128xf32>
    %c0_i32_4 = arith.constant 0 : i32
    %5 = arith.index_cast %c0_i32_4 : i32 to index
    %c0_5 = arith.constant 0 : index
    %c0_6 = arith.constant 0 : index
    %6 = vector.load %arg2[%5, %c0_5, %c0_6] : memref<8x8x128xf32, #tpu.memory_space<vmem>>, vector<1x8x128xf32>
    %7 = vector.shape_cast %6 : vector<1x8x128xf32> to vector<8x128xf32>
    %cst = arith.constant dense<0.000000e+00> : vector<8x128xf32>
    %8 = tpu.matmul %4, %3, %cst {dimension_numbers = #tpu.dot_dimension_numbers<[1], [0], [0], [1], [0, 0, 1, 1], [], []>} : vector<8x128xf32>, vector<128x128xf32>, vector<8x128xf32> -> vector<8x128xf32>
    %9 = arith.addf %7, %8 : vector<8x128xf32>
    %cst_7 = arith.constant 0.000000e+00 : f32
    %10 = vector.broadcast %cst_7 : f32 to vector<8x128xf32>
    %11 = arith.maximumf %9, %10 : vector<8x128xf32>
    %12 = arith.subf %11, %4 : vector<8x128xf32>
    %cst_8 = arith.constant 1.000000e-01 : f32
    %13 = vector.broadcast %cst_8 : f32 to vector<8x128xf32>
    %14 = arith.mulf %13, %12 : vector<8x128xf32>
    %15 = arith.addf %4, %14 : vector<8x128xf32>
    %16 = arith.index_cast %c0_i32_4 : i32 to index
    %c0_9 = arith.constant 0 : index
    %c0_10 = arith.constant 0 : index
    %17 = vector.load %arg4[%16, %c0_9, %c0_10] : memref<8x8x128xf32, #tpu.memory_space<vmem>>, vector<1x8x128xf32>
    %18 = vector.shape_cast %17 : vector<1x8x128xf32> to vector<8x128xf32>
    %19 = vector.shape_cast %15 : vector<8x128xf32> to vector<1x8x128xf32>
    tpu.vector_store %arg4[%16, %c0_9, %c0_10], %19 {strides = array<i32>} : memref<8x8x128xf32, #tpu.memory_space<vmem>>, vector<1x8x128xf32>,
    %c1_i32 = arith.constant 1 : i32
    %20 = arith.index_cast %c1_i32 : i32 to index
    %c0_11 = arith.constant 0 : index
    %c0_12 = arith.constant 0 : index
    %21 = vector.load %arg2[%20, %c0_11, %c0_12] : memref<8x8x128xf32, #tpu.memory_space<vmem>>, vector<1x8x128xf32>
    %22 = vector.shape_cast %21 : vector<1x8x128xf32> to vector<8x128xf32>
    %cst_13 = arith.constant dense<0.000000e+00> : vector<8x128xf32>
    %23 = tpu.matmul %15, %3, %cst_13 {dimension_numbers = #tpu.dot_dimension_numbers<[1], [0], [0], [1], [0, 0, 1, 1], [], []>} : vector<8x128xf32>, vector<128x128xf32>, vector<8x128xf32> -> vector<8x128xf32>
    %24 = arith.addf %22, %23 : vector<8x128xf32>
    %cst_14 = arith.constant 0.000000e+00 : f32
    %25 = vector.broadcast %cst_14 : f32 to vector<8x128xf32>
    %26 = arith.maximumf %24, %25 : vector<8x128xf32>
    %27 = arith.subf %26, %15 : vector<8x128xf32>
    %cst_15 = arith.constant 1.000000e-01 : f32
    %28 = vector.broadcast %cst_15 : f32 to vector<8x128xf32>
    %29 = arith.mulf %28, %27 : vector<8x128xf32>
    %30 = arith.addf %15, %29 : vector<8x128xf32>
    %31 = arith.index_cast %c1_i32 : i32 to index
    %c0_16 = arith.constant 0 : index
    %c0_17 = arith.constant 0 : index
    %32 = vector.load %arg4[%31, %c0_16, %c0_17] : memref<8x8x128xf32, #tpu.memory_space<vmem>>, vector<1x8x128xf32>
    %33 = vector.shape_cast %32 : vector<1x8x128xf32> to vector<8x128xf32>
    %34 = vector.shape_cast %30 : vector<8x128xf32> to vector<1x8x128xf32>
    tpu.vector_store %arg4[%31, %c0_16, %c0_17], %34 {strides = array<i32>} : memref<8x8x128xf32, #tpu.memory_space<vmem>>, vector<1x8x128xf32>,
    %c2_i32 = arith.constant 2 : i32
    %35 = arith.index_cast %c2_i32 : i32 to index
    %c0_18 = arith.constant 0 : index
    %c0_19 = arith.constant 0 : index
    %36 = vector.load %arg2[%35, %c0_18, %c0_19] : memref<8x8x128xf32, #tpu.memory_space<vmem>>, vector<1x8x128xf32>
    %37 = vector.shape_cast %36 : vector<1x8x128xf32> to vector<8x128xf32>
    %cst_20 = arith.constant dense<0.000000e+00> : vector<8x128xf32>
    %38 = tpu.matmul %30, %3, %cst_20 {dimension_numbers = #tpu.dot_dimension_numbers<[1], [0], [0], [1], [0, 0, 1, 1], [], []>} : vector<8x128xf32>, vector<128x128xf32>, vector<8x128xf32> -> vector<8x128xf32>
    %39 = arith.addf %37, %38 : vector<8x128xf32>
    %cst_21 = arith.constant 0.000000e+00 : f32
    %40 = vector.broadcast %cst_21 : f32 to vector<8x128xf32>
    %41 = arith.maximumf %39, %40 : vector<8x128xf32>
    %42 = arith.subf %41, %30 : vector<8x128xf32>
    %cst_22 = arith.constant 1.000000e-01 : f32
    %43 = vector.broadcast %cst_22 : f32 to vector<8x128xf32>
    %44 = arith.mulf %43, %42 : vector<8x128xf32>
    %45 = arith.addf %30, %44 : vector<8x128xf32>
    %46 = arith.index_cast %c2_i32 : i32 to index
    %c0_23 = arith.constant 0 : index
    %c0_24 = arith.constant 0 : index
    %47 = vector.load %arg4[%46, %c0_23, %c0_24] : memref<8x8x128xf32, #tpu.memory_space<vmem>>, vector<1x8x128xf32>
    %48 = vector.shape_cast %47 : vector<1x8x128xf32> to vector<8x128xf32>
    %49 = vector.shape_cast %45 : vector<8x128xf32> to vector<1x8x128xf32>
    tpu.vector_store %arg4[%46, %c0_23, %c0_24], %49 {strides = array<i32>} : memref<8x8x128xf32, #tpu.memory_space<vmem>>, vector<1x8x128xf32>,
    %c3_i32 = arith.constant 3 : i32
    %50 = arith.index_cast %c3_i32 : i32 to index
    %c0_25 = arith.constant 0 : index
    %c0_26 = arith.constant 0 : index
    %51 = vector.load %arg2[%50, %c0_25, %c0_26] : memref<8x8x128xf32, #tpu.memory_space<vmem>>, vector<1x8x128xf32>
    %52 = vector.shape_cast %51 : vector<1x8x128xf32> to vector<8x128xf32>
    %cst_27 = arith.constant dense<0.000000e+00> : vector<8x128xf32>
    %53 = tpu.matmul %45, %3, %cst_27 {dimension_numbers = #tpu.dot_dimension_numbers<[1], [0], [0], [1], [0, 0, 1, 1], [], []>} : vector<8x128xf32>, vector<128x128xf32>, vector<8x128xf32> -> vector<8x128xf32>
    %54 = arith.addf %52, %53 : vector<8x128xf32>
    %cst_28 = arith.constant 0.000000e+00 : f32
    %55 = vector.broadcast %cst_28 : f32 to vector<8x128xf32>
    %56 = arith.maximumf %54, %55 : vector<8x128xf32>
    %57 = arith.subf %56, %45 : vector<8x128xf32>
    %cst_29 = arith.constant 1.000000e-01 : f32
    %58 = vector.broadcast %cst_29 : f32 to vector<8x128xf32>
    %59 = arith.mulf %58, %57 : vector<8x128xf32>
    %60 = arith.addf %45, %59 : vector<8x128xf32>
    %61 = arith.index_cast %c3_i32 : i32 to index
    %c0_30 = arith.constant 0 : index
    %c0_31 = arith.constant 0 : index
    %62 = vector.load %arg4[%61, %c0_30, %c0_31] : memref<8x8x128xf32, #tpu.memory_space<vmem>>, vector<1x8x128xf32>
    %63 = vector.shape_cast %62 : vector<1x8x128xf32> to vector<8x128xf32>
    %64 = vector.shape_cast %60 : vector<8x128xf32> to vector<1x8x128xf32>
    tpu.vector_store %arg4[%61, %c0_30, %c0_31], %64 {strides = array<i32>} : memref<8x8x128xf32, #tpu.memory_space<vmem>>, vector<1x8x128xf32>,
    %c4_i32 = arith.constant 4 : i32
    %65 = arith.index_cast %c4_i32 : i32 to index
    %c0_32 = arith.constant 0 : index
    %c0_33 = arith.constant 0 : index
    %66 = vector.load %arg2[%65, %c0_32, %c0_33] : memref<8x8x128xf32, #tpu.memory_space<vmem>>, vector<1x8x128xf32>
    %67 = vector.shape_cast %66 : vector<1x8x128xf32> to vector<8x128xf32>
    %cst_34 = arith.constant dense<0.000000e+00> : vector<8x128xf32>
    %68 = tpu.matmul %60, %3, %cst_34 {dimension_numbers = #tpu.dot_dimension_numbers<[1], [0], [0], [1], [0, 0, 1, 1], [], []>} : vector<8x128xf32>, vector<128x128xf32>, vector<8x128xf32> -> vector<8x128xf32>
    %69 = arith.addf %67, %68 : vector<8x128xf32>
    %cst_35 = arith.constant 0.000000e+00 : f32
    %70 = vector.broadcast %cst_35 : f32 to vector<8x128xf32>
    %71 = arith.maximumf %69, %70 : vector<8x128xf32>
    %72 = arith.subf %71, %60 : vector<8x128xf32>
    %cst_36 = arith.constant 1.000000e-01 : f32
    %73 = vector.broadcast %cst_36 : f32 to vector<8x128xf32>
    %74 = arith.mulf %73, %72 : vector<8x128xf32>
    %75 = arith.addf %60, %74 : vector<8x128xf32>
    %76 = arith.index_cast %c4_i32 : i32 to index
    %c0_37 = arith.constant 0 : index
    %c0_38 = arith.constant 0 : index
    %77 = vector.load %arg4[%76, %c0_37, %c0_38] : memref<8x8x128xf32, #tpu.memory_space<vmem>>, vector<1x8x128xf32>
    %78 = vector.shape_cast %77 : vector<1x8x128xf32> to vector<8x128xf32>
    %79 = vector.shape_cast %75 : vector<8x128xf32> to vector<1x8x128xf32>
    tpu.vector_store %arg4[%76, %c0_37, %c0_38], %79 {strides = array<i32>} : memref<8x8x128xf32, #tpu.memory_space<vmem>>, vector<1x8x128xf32>,
    %c5_i32 = arith.constant 5 : i32
    %80 = arith.index_cast %c5_i32 : i32 to index
    %c0_39 = arith.constant 0 : index
    %c0_40 = arith.constant 0 : index
    %81 = vector.load %arg2[%80, %c0_39, %c0_40] : memref<8x8x128xf32, #tpu.memory_space<vmem>>, vector<1x8x128xf32>
    %82 = vector.shape_cast %81 : vector<1x8x128xf32> to vector<8x128xf32>
    %cst_41 = arith.constant dense<0.000000e+00> : vector<8x128xf32>
    %83 = tpu.matmul %75, %3, %cst_41 {dimension_numbers = #tpu.dot_dimension_numbers<[1], [0], [0], [1], [0, 0, 1, 1], [], []>} : vector<8x128xf32>, vector<128x128xf32>, vector<8x128xf32> -> vector<8x128xf32>
    %84 = arith.addf %82, %83 : vector<8x128xf32>
    %cst_42 = arith.constant 0.000000e+00 : f32
    %85 = vector.broadcast %cst_42 : f32 to vector<8x128xf32>
    %86 = arith.maximumf %84, %85 : vector<8x128xf32>
    %87 = arith.subf %86, %75 : vector<8x128xf32>
    %cst_43 = arith.constant 1.000000e-01 : f32
    %88 = vector.broadcast %cst_43 : f32 to vector<8x128xf32>
    %89 = arith.mulf %88, %87 : vector<8x128xf32>
    %90 = arith.addf %75, %89 : vector<8x128xf32>
    %91 = arith.index_cast %c5_i32 : i32 to index
    %c0_44 = arith.constant 0 : index
    %c0_45 = arith.constant 0 : index
    %92 = vector.load %arg4[%91, %c0_44, %c0_45] : memref<8x8x128xf32, #tpu.memory_space<vmem>>, vector<1x8x128xf32>
    %93 = vector.shape_cast %92 : vector<1x8x128xf32> to vector<8x128xf32>
    %94 = vector.shape_cast %90 : vector<8x128xf32> to vector<1x8x128xf32>
    tpu.vector_store %arg4[%91, %c0_44, %c0_45], %94 {strides = array<i32>} : memref<8x8x128xf32, #tpu.memory_space<vmem>>, vector<1x8x128xf32>,
    %c6_i32 = arith.constant 6 : i32
    %95 = arith.index_cast %c6_i32 : i32 to index
    %c0_46 = arith.constant 0 : index
    %c0_47 = arith.constant 0 : index
    %96 = vector.load %arg2[%95, %c0_46, %c0_47] : memref<8x8x128xf32, #tpu.memory_space<vmem>>, vector<1x8x128xf32>
    %97 = vector.shape_cast %96 : vector<1x8x128xf32> to vector<8x128xf32>
    %cst_48 = arith.constant dense<0.000000e+00> : vector<8x128xf32>
    %98 = tpu.matmul %90, %3, %cst_48 {dimension_numbers = #tpu.dot_dimension_numbers<[1], [0], [0], [1], [0, 0, 1, 1], [], []>} : vector<8x128xf32>, vector<128x128xf32>, vector<8x128xf32> -> vector<8x128xf32>
    %99 = arith.addf %97, %98 : vector<8x128xf32>
    %cst_49 = arith.constant 0.000000e+00 : f32
    %100 = vector.broadcast %cst_49 : f32 to vector<8x128xf32>
    %101 = arith.maximumf %99, %100 : vector<8x128xf32>
    %102 = arith.subf %101, %90 : vector<8x128xf32>
    %cst_50 = arith.constant 1.000000e-01 : f32
    %103 = vector.broadcast %cst_50 : f32 to vector<8x128xf32>
    %104 = arith.mulf %103, %102 : vector<8x128xf32>
    %105 = arith.addf %90, %104 : vector<8x128xf32>
    %106 = arith.index_cast %c6_i32 : i32 to index
    %c0_51 = arith.constant 0 : index
    %c0_52 = arith.constant 0 : index
    %107 = vector.load %arg4[%106, %c0_51, %c0_52] : memref<8x8x128xf32, #tpu.memory_space<vmem>>, vector<1x8x128xf32>
    %108 = vector.shape_cast %107 : vector<1x8x128xf32> to vector<8x128xf32>
    %109 = vector.shape_cast %105 : vector<8x128xf32> to vector<1x8x128xf32>
    tpu.vector_store %arg4[%106, %c0_51, %c0_52], %109 {strides = array<i32>} : memref<8x8x128xf32, #tpu.memory_space<vmem>>, vector<1x8x128xf32>,
    %c7_i32 = arith.constant 7 : i32
    %110 = arith.index_cast %c7_i32 : i32 to index
    %c0_53 = arith.constant 0 : index
    %c0_54 = arith.constant 0 : index
    %111 = vector.load %arg2[%110, %c0_53, %c0_54] : memref<8x8x128xf32, #tpu.memory_space<vmem>>, vector<1x8x128xf32>
    %112 = vector.shape_cast %111 : vector<1x8x128xf32> to vector<8x128xf32>
    %cst_55 = arith.constant dense<0.000000e+00> : vector<8x128xf32>
    %113 = tpu.matmul %105, %3, %cst_55 {dimension_numbers = #tpu.dot_dimension_numbers<[1], [0], [0], [1], [0, 0, 1, 1], [], []>} : vector<8x128xf32>, vector<128x128xf32>, vector<8x128xf32> -> vector<8x128xf32>
    %114 = arith.addf %112, %113 : vector<8x128xf32>
    %cst_56 = arith.constant 0.000000e+00 : f32
    %115 = vector.broadcast %cst_56 : f32 to vector<8x128xf32>
    %116 = arith.maximumf %114, %115 : vector<8x128xf32>
    %117 = arith.subf %116, %105 : vector<8x128xf32>
    %cst_57 = arith.constant 1.000000e-01 : f32
    %118 = vector.broadcast %cst_57 : f32 to vector<8x128xf32>
    %119 = arith.mulf %118, %117 : vector<8x128xf32>
    %120 = arith.addf %105, %119 : vector<8x128xf32>
    %121 = arith.index_cast %c7_i32 : i32 to index
    %c0_58 = arith.constant 0 : index
    %c0_59 = arith.constant 0 : index
    %122 = vector.load %arg4[%121, %c0_58, %c0_59] : memref<8x8x128xf32, #tpu.memory_space<vmem>>, vector<1x8x128xf32>
    %123 = vector.shape_cast %122 : vector<1x8x128xf32> to vector<8x128xf32>
    %124 = vector.shape_cast %120 : vector<8x128xf32> to vector<1x8x128xf32>
    tpu.vector_store %arg4[%121, %c0_58, %c0_59], %124 {strides = array<i32>} : memref<8x8x128xf32, #tpu.memory_space<vmem>>, vector<1x8x128xf32>,
    %c8_i32 = arith.constant 8 : i32
    %c0_60 = arith.constant 0 : index
    %c0_61 = arith.constant 0 : index
    %125 = vector.load %arg5[%c0_60, %c0_61] : memref<8x128xf32, #tpu.memory_space<vmem>>, vector<8x128xf32>
    tpu.vector_store %arg5[%c0_60, %c0_61], %120 {strides = array<i32>} : memref<8x128xf32, #tpu.memory_space<vmem>>, vector<8x128xf32>,
    return
  }
  func.func @transform_0(%arg0: i32, %arg1: i32) -> (i32, i32, i32) {
    %c0_i32 = arith.constant 0 : i32
    %c0_i32_0 = arith.constant 0 : i32
    return %arg1, %arg0, %c0_i32 : i32, i32, i32
  }
  func.func @transform_1(%arg0: i32, %arg1: i32) -> (i32, i32) {
    %c0_i32 = arith.constant 0 : i32
    %c0_i32_0 = arith.constant 0 : i32
    %c0_i32_1 = arith.constant 0 : i32
    return %c0_i32, %c0_i32_0 : i32, i32
  }
  func.func @transform_2(%arg0: i32, %arg1: i32) -> (i32, i32, i32) {
    %c0_i32 = arith.constant 0 : i32
    %c0_i32_0 = arith.constant 0 : i32
    return %arg1, %arg0, %c0_i32 : i32, i32, i32
  }
}

</mosaic_0001>

<llo_original>
// kernel: tpu_custom_call.1
$region0: #{tpu_custom_call.1}
  #allocation0 [shape = 'u32[]', space=smem, size = 0x4, offset = 0x4, fixed_abs, tag = 'smem constant byte address 0x4 - core index']
  #allocation1 [shape = 'u32[144,128]{1,0:T(1,128)}', space=vmem, size = 0x12000, scoped, tag = 'internal scratch']
  #allocation2 [shape = 'f32[8,128]{1,0:T(8,128)}', space=vmem, size = 0x1000, scoped, tag = 'scratch operand']
  %s0 = inlined_call_operand.hbm [shape: f32[8,8,128], index: 0, kind: input, shape index: {}]
  %s1 = inlined_call_operand.hbm [shape: f32[128,128], index: 1, kind: input, shape index: {}]
  %s2 = inlined_call_operand.hbm [shape: f32[8,8,128], index: 2, kind: output, shape index: {}]
  %s3 = sld [smem:[#allocation0]]
  $region30: #{tpu_custom_call.1} parent=0
    _
  %s5 = ssub.s32 1, %s3
  %s6 = scalar_select 0, %s5, %s3
  $region1: #{tpu_custom_call.1} parent=0
    #allocation3 [shape = 'u8[32768]{0}', space=vmem, size = 0x8000, scoped, tag = 'input window, operand 0, single buffered']
    #allocation4 [shape = 's32[1]{0}', space=sflag, size = 0x4, scoped, tag = 'scoped memory for tpu_custom_call.1']
    #allocation5 [shape = 's32[1]{0}', space=sflag, size = 0x4, scoped, tag = 'scoped memory for tpu_custom_call.1']
    #allocation6 [shape = 'u8[65536]{0}', space=vmem, size = 0x10000, scoped, tag = 'input window, operand 1, single buffered']
    #allocation7 [shape = 's32[1]{0}', space=sflag, size = 0x4, scoped, tag = 'scoped memory for tpu_custom_call.1']
    #allocation8 [shape = 'u8[32768]{0}', space=vmem, size = 0x8000, scoped, tag = 'output window, operand 0, single buffered']
    %7 = vsyncpa [#allocation4], 0
    %8 = vsyncpa [#allocation7], 0
    %9 = vsyncpa [#allocation5], 0
    // Predicated region
    $region2: #{tpu_custom_call.1} parent=1 // pred_check
      _
    $region3: #{tpu_custom_call.1} parent=1 // pred_check_branch
      %11 = sbr.rel (0) target = $region5
    $region4: #{tpu_custom_call.1} parent=1 // pred_region
      %s13 = ssub.s32 1024, 1024
      %14 = vsyncadd [#allocation4], %s13
      %s15 = sshll.u32 [#allocation3], 4
      %s16 = int_to_ptr.vmem [resolvable:$true] %s15
      %21 = dma.hbm_to_vmem [thread:$0]  %s0, 1024, %s16, [#allocation4], 128, 128, 8
    $region5: #{tpu_custom_call.1} parent=1 // pred_fallthru
      _
    // Predicated region
    $region6: #{tpu_custom_call.1} parent=1 // pred_check
      _
    $region7: #{tpu_custom_call.1} parent=1 // pred_check_branch
      %23 = sbr.rel (0) target = $region9
    $region8: #{tpu_custom_call.1} parent=1 // pred_region
      %s25 = ssub.s32 2048, 2048
      %26 = vsyncadd [#allocation7], %s25
      %s27 = sshll.u32 [#allocation6], 4
      %s28 = int_to_ptr.vmem [resolvable:$true] %s27
      %33 = dma.hbm_to_vmem [thread:$0]  %s1, 2048, %s28, [#allocation7], 128, 128, 8
    $region9: #{tpu_custom_call.1} parent=1 // pred_fallthru
      _
    // Predicated region
    $region10: #{tpu_custom_call.1} parent=1 // pred_check
      _
    $region11: #{tpu_custom_call.1} parent=1 // pred_check_branch
      %35 = sbr.rel (0) target = $region13
    $region12: #{tpu_custom_call.1} parent=1 // pred_region
      %36 = dma.done [#allocation4], 1024
    $region13: #{tpu_custom_call.1} parent=1 // pred_fallthru
      _
    // Predicated region
    $region14: #{tpu_custom_call.1} parent=1 // pred_check
      _
    $region15: #{tpu_custom_call.1} parent=1 // pred_check_branch
      %38 = sbr.rel (0) target = $region17
    $region16: #{tpu_custom_call.1} parent=1 // pred_region
      %39 = dma.done [#allocation7], 2048
    $region17: #{tpu_custom_call.1} parent=1 // pred_fallthru
      _
    %p40 = scmp.eq.s32.totalorder 0, 0
    // Predicated region
    $region18: #{tpu_custom_call.1} parent=1 // pred_check
      %p41 = pneg %p40
    $region19: #{tpu_custom_call.1} parent=1 // pred_check_branch
      %43 = sbr.rel (%p41) target = $region21
    $region20: #{tpu_custom_call.1} parent=1 // pred_region
      %44 = vst [vmem:[#allocation2] sm:$0xff] 0.0
    $region21: #{tpu_custom_call.1} parent=1 // pred_fallthru
      _
    %v45 = vld [vmem:[#allocation6] sm:$0xff]
    %v46 = vld [vmem:[#allocation6 + $0x8] sm:$0xff]
    %v47 = vld [vmem:[#allocation6 + $0x10] sm:$0xff]
    %v48 = vld [vmem:[#allocation6 + $0x18] sm:$0xff]
    %v49 = vld [vmem:[#allocation6 + $0x20] sm:$0xff]
    %v50 = vld [vmem:[#allocation6 + $0x28] sm:$0xff]
    %v51 = vld [vmem:[#allocation6 + $0x30] sm:$0xff]
    %v52 = vld [vmem:[#allocation6 + $0x38] sm:$0xff]
    %v53 = vld [vmem:[#allocation6 + $0x40] sm:$0xff]
    %v54 = vld [vmem:[#allocation6 + $0x48] sm:$0xff]
    %v55 = vld [vmem:[#allocation6 + $0x50] sm:$0xff]
    %v56 = vld [vmem:[#allocation6 + $0x58] sm:$0xff]
    %v57 = vld [vmem:[#allocation6 + $0x60] sm:$0xff]
    %v58 = vld [vmem:[#allocation6 + $0x68] sm:$0xff]
    %v59 = vld [vmem:[#allocation6 + $0x70] sm:$0xff]
    %v60 = vld [vmem:[#allocation6 + $0x78] sm:$0xff]
    %v61 = vld [vmem:[#allocation2] sm:$0xff]
    %v62 = vld [vmem:[#allocation3] sm:$0xff]
    %63 = vmatprep.subr.mxu0 0.0
    %64 = vmatpush1.msra.mxu0 %v60
    %65 = vmatprep.subr.mxu0 0.0
    %66 = vmatpush1.msra.mxu0 %v59
    %67 = vmatprep.subr.mxu0 0.0
    %68 = vmatpush1.msra.mxu0 %v58
    %69 = vmatprep.subr.mxu0 0.0
    %70 = vmatpush1.msra.mxu0 %v57
    %71 = vmatprep.subr.mxu0 0.0
    %72 = vmatpush1.msra.mxu0 %v56
    %73 = vmatprep.subr.mxu0 0.0
    %74 = vmatpush1.msra.mxu0 %v55
    %75 = vmatprep.subr.mxu0 0.0
    %76 = vmatpush1.msra.mxu0 %v54
    %77 = vmatprep.subr.mxu0 0.0
    %78 = vmatpush1.msra.mxu0 %v53
    %79 = vmatprep.subr.mxu0 0.0
    %80 = vmatpush1.msra.mxu0 %v52
    %81 = vmatprep.subr.mxu0 0.0
    %82 = vmatpush1.msra.mxu0 %v51
    %83 = vmatprep.subr.mxu0 0.0
    %84 = vmatpush1.msra.mxu0 %v50
    %85 = vmatprep.subr.mxu0 0.0
    %86 = vmatpush1.msra.mxu0 %v49
    %87 = vmatprep.subr.mxu0 0.0
    %88 = vmatpush1.msra.mxu0 %v48
    %89 = vmatprep.subr.mxu0 0.0
    %90 = vmatpush1.msra.mxu0 %v47
    %91 = vmatprep.subr.mxu0 0.0
    %92 = vmatpush1.msra.mxu0 %v46
    %93 = vmatprep.subr.mxu0 0.0
    %94 = vmatpush1.msra.mxu0 %v45
    %95 = vmatprep.subr.mxu0 0.0
    %96 = vmatpush2.msra.mxu0 0.0
    %97 = vmatprep.subr.mxu0 0.0
    %98 = vmatpush2.msra.mxu0 0.0
    %99 = vmatprep.subr.mxu0 0.0
    %100 = vmatpush2.msra.mxu0 0.0
    %101 = vmatprep.subr.mxu0 0.0
    %102 = vmatpush2.msra.mxu0 0.0
    %103 = vmatprep.subr.mxu0 0.0
    %104 = vmatpush2.msra.mxu0 0.0
    %105 = vmatprep.subr.mxu0 0.0
    %106 = vmatpush2.msra.mxu0 0.0
    %107 = vmatprep.subr.mxu0 0.0
    %108 = vmatpush2.msra.mxu0 0.0
    %109 = vmatprep.subr.mxu0 0.0
    %110 = vmatpush2.msra.mxu0 0.0
    %111 = vmatprep.subr.mxu0 0.0
    %112 = vmatpush2.msra.mxu0 0.0
    %113 = vmatprep.subr.mxu0 0.0
    %114 = vmatpush2.msra.mxu0 0.0
    %115 = vmatprep.subr.mxu0 0.0
    %116 = vmatpush2.msra.mxu0 0.0
    %117 = vmatprep.subr.mxu0 0.0
    %118 = vmatpush2.msra.mxu0 0.0
    %119 = vmatprep.subr.mxu0 0.0
    %120 = vmatpush2.msra.mxu0 0.0
    %121 = vmatprep.subr.mxu0 0.0
    %122 = vmatpush2.msra.mxu0 0.0
    %123 = vmatprep.subr.mxu0 0.0
    %124 = vmatpush2.msra.mxu0 0.0
    %125 = vmatprep.subr.mxu0 0.0
    %126 = vmatpush2.msra.mxu0 0.0
    %127 = vmatprep.mubr.f32.mxu0 0.0
    %128 = vmatmul.mubr.f32.gmra.mxu0 %v61
    %v129 = vpop.f32.mrf.mxu0
    %v130 = vadd.f32 0.0, %v129
    %v131 = vpop.f32.mrf.mxu0
    %132 = vdwg.mxu0
    %v133 = vadd.f32 %v62, %v130
    %v134 = vmax.f32 %v133, 0.0
    %v135 = vsub.f32 %v134, %v61
    %v136 = vmul.f32 %v135, 0.1
    %v137 = vadd.f32 %v61, %v136
    %138 = vst [vmem:[#allocation8] sm:$0xff] %v137
    %s139 = scalar_lea.vmem [#allocation3], 8
    %v140 = vld [vmem:[%s139] sm:$0xff]
    %141 = vmatprep.subr.mxu0 0.0
    %142 = vmatpush1.msra.mxu0 %v60
    %143 = vmatprep.subr.mxu0 0.0
    %144 = vmatpush1.msra.mxu0 %v59
    %145 = vmatprep.subr.mxu0 0.0
    %146 = vmatpush1.msra.mxu0 %v58
    %147 = vmatprep.subr.mxu0 0.0
    %148 = vmatpush1.msra.mxu0 %v57
    %149 = vmatprep.subr.mxu0 0.0
    %150 = vmatpush1.msra.mxu0 %v56
    %151 = vmatprep.subr.mxu0 0.0
    %152 = vmatpush1.msra.mxu0 %v55
    %153 = vmatprep.subr.mxu0 0.0
    %154 = vmatpush1.msra.mxu0 %v54
    %155 = vmatprep.subr.mxu0 0.0
    %156 = vmatpush1.msra.mxu0 %v53
    %157 = vmatprep.subr.mxu0 0.0
    %158 = vmatpush1.msra.mxu0 %v52
    %159 = vmatprep.subr.mxu0 0.0
    %160 = vmatpush1.msra.mxu0 %v51
    %161 = vmatprep.subr.mxu0 0.0
    %162 = vmatpush1.msra.mxu0 %v50
    %163 = vmatprep.subr.mxu0 0.0
    %164 = vmatpush1.msra.mxu0 %v49
    %165 = vmatprep.subr.mxu0 0.0
    %166 = vmatpush1.msra.mxu0 %v48
    %167 = vmatprep.subr.mxu0 0.0
    %168 = vmatpush1.msra.mxu0 %v47
    %169 = vmatprep.subr.mxu0 0.0
    %170 = vmatpush1.msra.mxu0 %v46
    %171 = vmatprep.subr.mxu0 0.0
    %172 = vmatpush1.msra.mxu0 %v45
    %173 = vmatprep.subr.mxu0 0.0
    %174 = vmatpush2.msra.mxu0 0.0
    %175 = vmatprep.subr.mxu0 0.0
    %176 = vmatpush2.msra.mxu0 0.0
    %177 = vmatprep.subr.mxu0 0.0
    %178 = vmatpush2.msra.mxu0 0.0
    %179 = vmatprep.subr.mxu0 0.0
    %180 = vmatpush2.msra.mxu0 0.0
    %181 = vmatprep.subr.mxu0 0.0
    %182 = vmatpush2.msra.mxu0 0.0
    %183 = vmatprep.subr.mxu0 0.0
    %184 = vmatpush2.msra.mxu0 0.0
    %185 = vmatprep.subr.mxu0 0.0
    %186 = vmatpush2.msra.mxu0 0.0
    %187 = vmatprep.subr.mxu0 0.0
    %188 = vmatpush2.msra.mxu0 0.0
    %189 = vmatprep.subr.mxu0 0.0
    %190 = vmatpush2.msra.mxu0 0.0
    %191 = vmatprep.subr.mxu0 0.0
    %192 = vmatpush2.msra.mxu0 0.0
    %193 = vmatprep.subr.mxu0 0.0
    %194 = vmatpush2.msra.mxu0 0.0
    %195 = vmatprep.subr.mxu0 0.0
    %196 = vmatpush2.msra.mxu0 0.0
    %197 = vmatprep.subr.mxu0 0.0
    %198 = vmatpush2.msra.mxu0 0.0
    %199 = vmatprep.subr.mxu0 0.0
    %200 = vmatpush2.msra.mxu0 0.0
    %201 = vmatprep.subr.mxu0 0.0
    %202 = vmatpush2.msra.mxu0 0.0
    %203 = vmatprep.subr.mxu0 0.0
    %204 = vmatpush2.msra.mxu0 0.0
    %205 = vmatprep.mubr.f32.mxu0 0.0
    %206 = vmatmul.mubr.f32.gmra.mxu0 %v137
    %v207 = vpop.f32.mrf.mxu0
    %v208 = vadd.f32 0.0, %v207
    %v209 = vpop.f32.mrf.mxu0
    %210 = vdwg.mxu0
    %v211 = vadd.f32 %v140, %v208
    %v212 = vmax.f32 %v211, 0.0
    %v213 = vsub.f32 %v212, %v137
    %v214 = vmul.f32 %v213, 0.1
    %v215 = vadd.f32 %v137, %v214
    %s216 = scalar_lea.vmem [#allocation8], 8
    %217 = vst [vmem:[%s216] sm:$0xff] %v215
    %s218 = scalar_lea.vmem [#allocation3], 16
    %v219 = vld [vmem:[%s218] sm:$0xff]
    %220 = vmatprep.subr.mxu0 0.0
    %221 = vmatpush1.msra.mxu0 %v60
    %222 = vmatprep.subr.mxu0 0.0
    %223 = vmatpush1.msra.mxu0 %v59
    %224 = vmatprep.subr.mxu0 0.0
    %225 = vmatpush1.msra.mxu0 %v58
    %226 = vmatprep.subr.mxu0 0.0
    %227 = vmatpush1.msra.mxu0 %v57
    %228 = vmatprep.subr.mxu0 0.0
    %229 = vmatpush1.msra.mxu0 %v56
    %230 = vmatprep.subr.mxu0 0.0
    %231 = vmatpush1.msra.mxu0 %v55
    %232 = vmatprep.subr.mxu0 0.0
    %233 = vmatpush1.msra.mxu0 %v54
    %234 = vmatprep.subr.mxu0 0.0
    %235 = vmatpush1.msra.mxu0 %v53
    %236 = vmatprep.subr.mxu0 0.0
    %237 = vmatpush1.msra.mxu0 %v52
    %238 = vmatprep.subr.mxu0 0.0
    %239 = vmatpush1.msra.mxu0 %v51
    %240 = vmatprep.subr.mxu0 0.0
    %241 = vmatpush1.msra.mxu0 %v50
    %242 = vmatprep.subr.mxu0 0.0
    %243 = vmatpush1.msra.mxu0 %v49
    %244 = vmatprep.subr.mxu0 0.0
    %245 = vmatpush1.msra.mxu0 %v48
    %246 = vmatprep.subr.mxu0 0.0
    %247 = vmatpush1.msra.mxu0 %v47
    %248 = vmatprep.subr.mxu0 0.0
    %249 = vmatpush1.msra.mxu0 %v46
    %250 = vmatprep.subr.mxu0 0.0
    %251 = vmatpush1.msra.mxu0 %v45
    %252 = vmatprep.subr.mxu0 0.0
    %253 = vmatpush2.msra.mxu0 0.0
    %254 = vmatprep.subr.mxu0 0.0
    %255 = vmatpush2.msra.mxu0 0.0
    %256 = vmatprep.subr.mxu0 0.0
    %257 = vmatpush2.msra.mxu0 0.0
    %258 = vmatprep.subr.mxu0 0.0
    %259 = vmatpush2.msra.mxu0 0.0
    %260 = vmatprep.subr.mxu0 0.0
    %261 = vmatpush2.msra.mxu0 0.0
    %262 = vmatprep.subr.mxu0 0.0
    %263 = vmatpush2.msra.mxu0 0.0
    %264 = vmatprep.subr.mxu0 0.0
    %265 = vmatpush2.msra.mxu0 0.0
    %266 = vmatprep.subr.mxu0 0.0
    %267 = vmatpush2.msra.mxu0 0.0
    %268 = vmatprep.subr.mxu0 0.0
    %269 = vmatpush2.msra.mxu0 0.0
    %270 = vmatprep.subr.mxu0 0.0
    %271 = vmatpush2.msra.mxu0 0.0
    %272 = vmatprep.subr.mxu0 0.0
    %273 = vmatpush2.msra.mxu0 0.0
    %274 = vmatprep.subr.mxu0 0.0
    %275 = vmatpush2.msra.mxu0 0.0
    %276 = vmatprep.subr.mxu0 0.0
    %277 = vmatpush2.msra.mxu0 0.0
    %278 = vmatprep.subr.mxu0 0.0
    %279 = vmatpush2.msra.mxu0 0.0
    %280 = vmatprep.subr.mxu0 0.0
    %281 = vmatpush2.msra.mxu0 0.0
    %282 = vmatprep.subr.mxu0 0.0
    %283 = vmatpush2.msra.mxu0 0.0
    %284 = vmatprep.mubr.f32.mxu0 0.0
    %285 = vmatmul.mubr.f32.gmra.mxu0 %v215
    %v286 = vpop.f32.mrf.mxu0
    %v287 = vadd.f32 0.0, %v286
    %v288 = vpop.f32.mrf.mxu0
    %289 = vdwg.mxu0
    %v290 = vadd.f32 %v219, %v287
    %v291 = vmax.f32 %v290, 0.0
    %v292 = vsub.f32 %v291, %v215
    %v293 = vmul.f32 %v292, 0.1
    %v294 = vadd.f32 %v215, %v293
    %s295 = scalar_lea.vmem [#allocation8], 16
    %296 = vst [vmem:[%s295] sm:$0xff] %v294
    %s297 = scalar_lea.vmem [#allocation3], 24
    %v298 = vld [vmem:[%s297] sm:$0xff]
    %299 = vmatprep.subr.mxu0 0.0
    %300 = vmatpush1.msra.mxu0 %v60
    %301 = vmatprep.subr.mxu0 0.0
    %302 = vmatpush1.msra.mxu0 %v59
    %303 = vmatprep.subr.mxu0 0.0
    %304 = vmatpush1.msra.mxu0 %v58
    %305 = vmatprep.subr.mxu0 0.0
    %306 = vmatpush1.msra.mxu0 %v57
    %307 = vmatprep.subr.mxu0 0.0
    %308 = vmatpush1.msra.mxu0 %v56
    %309 = vmatprep.subr.mxu0 0.0
    %310 = vmatpush1.msra.mxu0 %v55
    %311 = vmatprep.subr.mxu0 0.0
    %312 = vmatpush1.msra.mxu0 %v54
    %313 = vmatprep.subr.mxu0 0.0
    %314 = vmatpush1.msra.mxu0 %v53
    %315 = vmatprep.subr.mxu0 0.0
    %316 = vmatpush1.msra.mxu0 %v52
    %317 = vmatprep.subr.mxu0 0.0
    %318 = vmatpush1.msra.mxu0 %v51
    %319 = vmatprep.subr.mxu0 0.0
    %320 = vmatpush1.msra.mxu0 %v50
    %321 = vmatprep.subr.mxu0 0.0
    %322 = vmatpush1.msra.mxu0 %v49
    %323 = vmatprep.subr.mxu0 0.0
    %324 = vmatpush1.msra.mxu0 %v48
    %325 = vmatprep.subr.mxu0 0.0
    %326 = vmatpush1.msra.mxu0 %v47
    %327 = vmatprep.subr.mxu0 0.0
    %328 = vmatpush1.msra.mxu0 %v46
    %329 = vmatprep.subr.mxu0 0.0
    %330 = vmatpush1.msra.mxu0 %v45
    %331 = vmatprep.subr.mxu0 0.0
    %332 = vmatpush2.msra.mxu0 0.0
    %333 = vmatprep.subr.mxu0 0.0
    %334 = vmatpush2.msra.mxu0 0.0
    %335 = vmatprep.subr.mxu0 0.0
    %336 = vmatpush2.msra.mxu0 0.0
    %337 = vmatprep.subr.mxu0 0.0
    %338 = vmatpush2.msra.mxu0 0.0
    %339 = vmatprep.subr.mxu0 0.0
    %340 = vmatpush2.msra.mxu0 0.0
    %341 = vmatprep.subr.mxu0 0.0
    %342 = vmatpush2.msra.mxu0 0.0
    %343 = vmatprep.subr.mxu0 0.0
    %344 = vmatpush2.msra.mxu0 0.0
    %345 = vmatprep.subr.mxu0 0.0
    %346 = vmatpush2.msra.mxu0 0.0
    %347 = vmatprep.subr.mxu0 0.0
    %348 = vmatpush2.msra.mxu0 0.0
    %349 = vmatprep.subr.mxu0 0.0
    %350 = vmatpush2.msra.mxu0 0.0
    %351 = vmatprep.subr.mxu0 0.0
    %352 = vmatpush2.msra.mxu0 0.0
    %353 = vmatprep.subr.mxu0 0.0
    %354 = vmatpush2.msra.mxu0 0.0
    %355 = vmatprep.subr.mxu0 0.0
    %356 = vmatpush2.msra.mxu0 0.0
    %357 = vmatprep.subr.mxu0 0.0
    %358 = vmatpush2.msra.mxu0 0.0
    %359 = vmatprep.subr.mxu0 0.0
    %360 = vmatpush2.msra.mxu0 0.0
    %361 = vmatprep.subr.mxu0 0.0
    %362 = vmatpush2.msra.mxu0 0.0
    %363 = vmatprep.mubr.f32.mxu0 0.0
    %364 = vmatmul.mubr.f32.gmra.mxu0 %v294
    %v365 = vpop.f32.mrf.mxu0
    %v366 = vadd.f32 0.0, %v365
    %v367 = vpop.f32.mrf.mxu0
    %368 = vdwg.mxu0
    %v369 = vadd.f32 %v298, %v366
    %v370 = vmax.f32 %v369, 0.0
    %v371 = vsub.f32 %v370, %v294
    %v372 = vmul.f32 %v371, 0.1
    %v373 = vadd.f32 %v294, %v372
    %s374 = scalar_lea.vmem [#allocation8], 24
    %375 = vst [vmem:[%s374] sm:$0xff] %v373
    %s376 = scalar_lea.vmem [#allocation3], 32
    %v377 = vld [vmem:[%s376] sm:$0xff]
    %378 = vmatprep.subr.mxu0 0.0
    %379 = vmatpush1.msra.mxu0 %v60
    %380 = vmatprep.subr.mxu0 0.0
    %381 = vmatpush1.msra.mxu0 %v59
    %382 = vmatprep.subr.mxu0 0.0
    %383 = vmatpush1.msra.mxu0 %v58
    %384 = vmatprep.subr.mxu0 0.0
    %385 = vmatpush1.msra.mxu0 %v57
    %386 = vmatprep.subr.mxu0 0.0
    %387 = vmatpush1.msra.mxu0 %v56
    %388 = vmatprep.subr.mxu0 0.0
    %389 = vmatpush1.msra.mxu0 %v55
    %390 = vmatprep.subr.mxu0 0.0
    %391 = vmatpush1.msra.mxu0 %v54
    %392 = vmatprep.subr.mxu0 0.0
    %393 = vmatpush1.msra.mxu0 %v53
    %394 = vmatprep.subr.mxu0 0.0
    %395 = vmatpush1.msra.mxu0 %v52
    %396 = vmatprep.subr.mxu0 0.0
    %397 = vmatpush1.msra.mxu0 %v51
    %398 = vmatprep.subr.mxu0 0.0
    %399 = vmatpush1.msra.mxu0 %v50
    %400 = vmatprep.subr.mxu0 0.0
    %401 = vmatpush1.msra.mxu0 %v49
    %402 = vmatprep.subr.mxu0 0.0
    %403 = vmatpush1.msra.mxu0 %v48
    %404 = vmatprep.subr.mxu0 0.0
    %405 = vmatpush1.msra.mxu0 %v47
    %406 = vmatprep.subr.mxu0 0.0
    %407 = vmatpush1.msra.mxu0 %v46
    %408 = vmatprep.subr.mxu0 0.0
    %409 = vmatpush1.msra.mxu0 %v45
    %410 = vmatprep.subr.mxu0 0.0
    %411 = vmatpush2.msra.mxu0 0.0
    %412 = vmatprep.subr.mxu0 0.0
    %413 = vmatpush2.msra.mxu0 0.0
    %414 = vmatprep.subr.mxu0 0.0
    %415 = vmatpush2.msra.mxu0 0.0
    %416 = vmatprep.subr.mxu0 0.0
    %417 = vmatpush2.msra.mxu0 0.0
    %418 = vmatprep.subr.mxu0 0.0
    %419 = vmatpush2.msra.mxu0 0.0
    %420 = vmatprep.subr.mxu0 0.0
    %421 = vmatpush2.msra.mxu0 0.0
    %422 = vmatprep.subr.mxu0 0.0
    %423 = vmatpush2.msra.mxu0 0.0
    %424 = vmatprep.subr.mxu0 0.0
    %425 = vmatpush2.msra.mxu0 0.0
    %426 = vmatprep.subr.mxu0 0.0
    %427 = vmatpush2.msra.mxu0 0.0
    %428 = vmatprep.subr.mxu0 0.0
    %429 = vmatpush2.msra.mxu0 0.0
    %430 = vmatprep.subr.mxu0 0.0
    %431 = vmatpush2.msra.mxu0 0.0
    %432 = vmatprep.subr.mxu0 0.0
    %433 = vmatpush2.msra.mxu0 0.0
    %434 = vmatprep.subr.mxu0 0.0
    %435 = vmatpush2.msra.mxu0 0.0
    %436 = vmatprep.subr.mxu0 0.0
    %437 = vmatpush2.msra.mxu0 0.0
    %438 = vmatprep.subr.mxu0 0.0
    %439 = vmatpush2.msra.mxu0 0.0
    %440 = vmatprep.subr.mxu0 0.0
    %441 = vmatpush2.msra.mxu0 0.0
    %442 = vmatprep.mubr.f32.mxu0 0.0
    %443 = vmatmul.mubr.f32.gmra.mxu0 %v373
    %v444 = vpop.f32.mrf.mxu0
    %v445 = vadd.f32 0.0, %v444
    %v446 = vpop.f32.mrf.mxu0
    %447 = vdwg.mxu0
    %v448 = vadd.f32 %v377, %v445
    %v449 = vmax.f32 %v448, 0.0
    %v450 = vsub.f32 %v449, %v373
    %v451 = vmul.f32 %v450, 0.1
    %v452 = vadd.f32 %v373, %v451
    %s453 = scalar_lea.vmem [#allocation8], 32
    %454 = vst [vmem:[%s453] sm:$0xff] %v452
    %s455 = scalar_lea.vmem [#allocation3], 40
    %v456 = vld [vmem:[%s455] sm:$0xff]
    %457 = vmatprep.subr.mxu0 0.0
    %458 = vmatpush1.msra.mxu0 %v60
    %459 = vmatprep.subr.mxu0 0.0
    %460 = vmatpush1.msra.mxu0 %v59
    %461 = vmatprep.subr.mxu0 0.0
    %462 = vmatpush1.msra.mxu0 %v58
    %463 = vmatprep.subr.mxu0 0.0
    %464 = vmatpush1.msra.mxu0 %v57
    %465 = vmatprep.subr.mxu0 0.0
    %466 = vmatpush1.msra.mxu0 %v56
    %467 = vmatprep.subr.mxu0 0.0
    %468 = vmatpush1.msra.mxu0 %v55
    %469 = vmatprep.subr.mxu0 0.0
    %470 = vmatpush1.msra.mxu0 %v54
    %471 = vmatprep.subr.mxu0 0.0
    %472 = vmatpush1.msra.mxu0 %v53
    %473 = vmatprep.subr.mxu0 0.0
    %474 = vmatpush1.msra.mxu0 %v52
    %475 = vmatprep.subr.mxu0 0.0
    %476 = vmatpush1.msra.mxu0 %v51
    %477 = vmatprep.subr.mxu0 0.0
    %478 = vmatpush1.msra.mxu0 %v50
    %479 = vmatprep.subr.mxu0 0.0
    %480 = vmatpush1.msra.mxu0 %v49
    %481 = vmatprep.subr.mxu0 0.0
    %482 = vmatpush1.msra.mxu0 %v48
    %483 = vmatprep.subr.mxu0 0.0
    %484 = vmatpush1.msra.mxu0 %v47
    %485 = vmatprep.subr.mxu0 0.0
    %486 = vmatpush1.msra.mxu0 %v46
    %487 = vmatprep.subr.mxu0 0.0
    %488 = vmatpush1.msra.mxu0 %v45
    %489 = vmatprep.subr.mxu0 0.0
    %490 = vmatpush2.msra.mxu0 0.0
    %491 = vmatprep.subr.mxu0 0.0
    %492 = vmatpush2.msra.mxu0 0.0
    %493 = vmatprep.subr.mxu0 0.0
    %494 = vmatpush2.msra.mxu0 0.0
    %495 = vmatprep.subr.mxu0 0.0
    %496 = vmatpush2.msra.mxu0 0.0
    %497 = vmatprep.subr.mxu0 0.0
    %498 = vmatpush2.msra.mxu0 0.0
    %499 = vmatprep.subr.mxu0 0.0
    %500 = vmatpush2.msra.mxu0 0.0
    %501 = vmatprep.subr.mxu0 0.0
    %502 = vmatpush2.msra.mxu0 0.0
    %503 = vmatprep.subr.mxu0 0.0
    %504 = vmatpush2.msra.mxu0 0.0
    %505 = vmatprep.subr.mxu0 0.0
    %506 = vmatpush2.msra.mxu0 0.0
    %507 = vmatprep.subr.mxu0 0.0
    %508 = vmatpush2.msra.mxu0 0.0
    %509 = vmatprep.subr.mxu0 0.0
    %510 = vmatpush2.msra.mxu0 0.0
    %511 = vmatprep.subr.mxu0 0.0
    %512 = vmatpush2.msra.mxu0 0.0
    %513 = vmatprep.subr.mxu0 0.0
    %514 = vmatpush2.msra.mxu0 0.0
    %515 = vmatprep.subr.mxu0 0.0
    %516 = vmatpush2.msra.mxu0 0.0
    %517 = vmatprep.subr.mxu0 0.0
    %518 = vmatpush2.msra.mxu0 0.0
    %519 = vmatprep.subr.mxu0 0.0
    %520 = vmatpush2.msra.mxu0 0.0
    %521 = vmatprep.mubr.f32.mxu0 0.0
    %522 = vmatmul.mubr.f32.gmra.mxu0 %v452
    %v523 = vpop.f32.mrf.mxu0
    %v524 = vadd.f32 0.0, %v523
    %v525 = vpop.f32.mrf.mxu0
    %526 = vdwg.mxu0
    %v527 = vadd.f32 %v456, %v524
    %v528 = vmax.f32 %v527, 0.0
    %v529 = vsub.f32 %v528, %v452
    %v530 = vmul.f32 %v529, 0.1
    %v531 = vadd.f32 %v452, %v530
    %s532 = scalar_lea.vmem [#allocation8], 40
    %533 = vst [vmem:[%s532] sm:$0xff] %v531
    %s534 = scalar_lea.vmem [#allocation3], 48
    %v535 = vld [vmem:[%s534] sm:$0xff]
    %536 = vmatprep.subr.mxu0 0.0
    %537 = vmatpush1.msra.mxu0 %v60
    %538 = vmatprep.subr.mxu0 0.0
    %539 = vmatpush1.msra.mxu0 %v59
    %540 = vmatprep.subr.mxu0 0.0
    %541 = vmatpush1.msra.mxu0 %v58
    %542 = vmatprep.subr.mxu0 0.0
    %543 = vmatpush1.msra.mxu0 %v57
    %544 = vmatprep.subr.mxu0 0.0
    %545 = vmatpush1.msra.mxu0 %v56
    %546 = vmatprep.subr.mxu0 0.0
    %547 = vmatpush1.msra.mxu0 %v55
    %548 = vmatprep.subr.mxu0 0.0
    %549 = vmatpush1.msra.mxu0 %v54
    %550 = vmatprep.subr.mxu0 0.0
    %551 = vmatpush1.msra.mxu0 %v53
    %552 = vmatprep.subr.mxu0 0.0
    %553 = vmatpush1.msra.mxu0 %v52
    %554 = vmatprep.subr.mxu0 0.0
    %555 = vmatpush1.msra.mxu0 %v51
    %556 = vmatprep.subr.mxu0 0.0
    %557 = vmatpush1.msra.mxu0 %v50
    %558 = vmatprep.subr.mxu0 0.0
    %559 = vmatpush1.msra.mxu0 %v49
    %560 = vmatprep.subr.mxu0 0.0
    %561 = vmatpush1.msra.mxu0 %v48
    %562 = vmatprep.subr.mxu0 0.0
    %563 = vmatpush1.msra.mxu0 %v47
    %564 = vmatprep.subr.mxu0 0.0
    %565 = vmatpush1.msra.mxu0 %v46
    %566 = vmatprep.subr.mxu0 0.0
    %567 = vmatpush1.msra.mxu0 %v45
    %568 = vmatprep.subr.mxu0 0.0
    %569 = vmatpush2.msra.mxu0 0.0
    %570 = vmatprep.subr.mxu0 0.0
    %571 = vmatpush2.msra.mxu0 0.0
    %572 = vmatprep.subr.mxu0 0.0
    %573 = vmatpush2.msra.mxu0 0.0
    %574 = vmatprep.subr.mxu0 0.0
    %575 = vmatpush2.msra.mxu0 0.0
    %576 = vmatprep.subr.mxu0 0.0
    %577 = vmatpush2.msra.mxu0 0.0
    %578 = vmatprep.subr.mxu0 0.0
    %579 = vmatpush2.msra.mxu0 0.0
    %580 = vmatprep.subr.mxu0 0.0
    %581 = vmatpush2.msra.mxu0 0.0
    %582 = vmatprep.subr.mxu0 0.0
    %583 = vmatpush2.msra.mxu0 0.0
    %584 = vmatprep.subr.mxu0 0.0
    %585 = vmatpush2.msra.mxu0 0.0
    %586 = vmatprep.subr.mxu0 0.0
    %587 = vmatpush2.msra.mxu0 0.0
    %588 = vmatprep.subr.mxu0 0.0
    %589 = vmatpush2.msra.mxu0 0.0
    %590 = vmatprep.subr.mxu0 0.0
    %591 = vmatpush2.msra.mxu0 0.0
    %592 = vmatprep.subr.mxu0 0.0
    %593 = vmatpush2.msra.mxu0 0.0
    %594 = vmatprep.subr.mxu0 0.0
    %595 = vmatpush2.msra.mxu0 0.0
    %596 = vmatprep.subr.mxu0 0.0
    %597 = vmatpush2.msra.mxu0 0.0
    %598 = vmatprep.subr.mxu0 0.0
    %599 = vmatpush2.msra.mxu0 0.0
    %600 = vmatprep.mubr.f32.mxu0 0.0
    %601 = vmatmul.mubr.f32.gmra.mxu0 %v531
    %v602 = vpop.f32.mrf.mxu0
    %v603 = vadd.f32 0.0, %v602
    %v604 = vpop.f32.mrf.mxu0
    %605 = vdwg.mxu0
    %v606 = vadd.f32 %v535, %v603
    %v607 = vmax.f32 %v606, 0.0
    %v608 = vsub.f32 %v607, %v531
    %v609 = vmul.f32 %v608, 0.1
    %v610 = vadd.f32 %v531, %v609
    %s611 = scalar_lea.vmem [#allocation8], 48
    %612 = vst [vmem:[%s611] sm:$0xff] %v610
    %s613 = scalar_lea.vmem [#allocation3], 56
    %v614 = vld [vmem:[%s613] sm:$0xff]
    %615 = vmatprep.subr.mxu0 0.0
    %616 = vmatpush1.msra.mxu0 %v60
    %617 = vmatprep.subr.mxu0 0.0
    %618 = vmatpush1.msra.mxu0 %v59
    %619 = vmatprep.subr.mxu0 0.0
    %620 = vmatpush1.msra.mxu0 %v58
    %621 = vmatprep.subr.mxu0 0.0
    %622 = vmatpush1.msra.mxu0 %v57
    %623 = vmatprep.subr.mxu0 0.0
    %624 = vmatpush1.msra.mxu0 %v56
    %625 = vmatprep.subr.mxu0 0.0
    %626 = vmatpush1.msra.mxu0 %v55
    %627 = vmatprep.subr.mxu0 0.0
    %628 = vmatpush1.msra.mxu0 %v54
    %629 = vmatprep.subr.mxu0 0.0
    %630 = vmatpush1.msra.mxu0 %v53
    %631 = vmatprep.subr.mxu0 0.0
    %632 = vmatpush1.msra.mxu0 %v52
    %633 = vmatprep.subr.mxu0 0.0
    %634 = vmatpush1.msra.mxu0 %v51
    %635 = vmatprep.subr.mxu0 0.0
    %636 = vmatpush1.msra.mxu0 %v50
    %637 = vmatprep.subr.mxu0 0.0
    %638 = vmatpush1.msra.mxu0 %v49
    %639 = vmatprep.subr.mxu0 0.0
    %640 = vmatpush1.msra.mxu0 %v48
    %641 = vmatprep.subr.mxu0 0.0
    %642 = vmatpush1.msra.mxu0 %v47
    %643 = vmatprep.subr.mxu0 0.0
    %644 = vmatpush1.msra.mxu0 %v46
    %645 = vmatprep.subr.mxu0 0.0
    %646 = vmatpush1.msra.mxu0 %v45
    %647 = vmatprep.subr.mxu0 0.0
    %648 = vmatpush2.msra.mxu0 0.0
    %649 = vmatprep.subr.mxu0 0.0
    %650 = vmatpush2.msra.mxu0 0.0
    %651 = vmatprep.subr.mxu0 0.0
    %652 = vmatpush2.msra.mxu0 0.0
    %653 = vmatprep.subr.mxu0 0.0
    %654 = vmatpush2.msra.mxu0 0.0
    %655 = vmatprep.subr.mxu0 0.0
    %656 = vmatpush2.msra.mxu0 0.0
    %657 = vmatprep.subr.mxu0 0.0
    %658 = vmatpush2.msra.mxu0 0.0
    %659 = vmatprep.subr.mxu0 0.0
    %660 = vmatpush2.msra.mxu0 0.0
    %661 = vmatprep.subr.mxu0 0.0
    %662 = vmatpush2.msra.mxu0 0.0
    %663 = vmatprep.subr.mxu0 0.0
    %664 = vmatpush2.msra.mxu0 0.0
    %665 = vmatprep.subr.mxu0 0.0
    %666 = vmatpush2.msra.mxu0 0.0
    %667 = vmatprep.subr.mxu0 0.0
    %668 = vmatpush2.msra.mxu0 0.0
    %669 = vmatprep.subr.mxu0 0.0
    %670 = vmatpush2.msra.mxu0 0.0
    %671 = vmatprep.subr.mxu0 0.0
    %672 = vmatpush2.msra.mxu0 0.0
    %673 = vmatprep.subr.mxu0 0.0
    %674 = vmatpush2.msra.mxu0 0.0
    %675 = vmatprep.subr.mxu0 0.0
    %676 = vmatpush2.msra.mxu0 0.0
    %677 = vmatprep.subr.mxu0 0.0
    %678 = vmatpush2.msra.mxu0 0.0
    %679 = vmatprep.mubr.f32.mxu0 0.0
    %680 = vmatmul.mubr.f32.gmra.mxu0 %v610
    %v681 = vpop.f32.mrf.mxu0
    %v682 = vadd.f32 0.0, %v681
    %v683 = vpop.f32.mrf.mxu0
    %684 = vdwg.mxu0
    %v685 = vadd.f32 %v614, %v682
    %v686 = vmax.f32 %v685, 0.0
    %v687 = vsub.f32 %v686, %v610
    %v688 = vmul.f32 %v687, 0.1
    %v689 = vadd.f32 %v610, %v688
    %s690 = scalar_lea.vmem [#allocation8], 56
    %691 = vst [vmem:[%s690] sm:$0xff] %v689
    %692 = vst [vmem:[#allocation2] sm:$0xff] %v689
    // Predicated region
    $region22: #{tpu_custom_call.1} parent=1 // pred_check
      _
    $region23: #{tpu_custom_call.1} parent=1 // pred_check_branch
      %694 = sbr.rel (0) target = $region25
    $region24: #{tpu_custom_call.1} parent=1 // pred_region
      %s696 = ssub.s32 1024, 1024
      %697 = vsyncadd [#allocation5], %s696
      %s698 = sshll.u32 [#allocation8], 4
      %s699 = int_to_ptr.vmem [resolvable:$true] %s698
      %704 = dma.vmem_to_hbm [thread:$0]  %s699, 1024, %s2, [#allocation5], 128, 128, 8
    $region25: #{tpu_custom_call.1} parent=1 // pred_fallthru
      _
    // Predicated region
    $region26: #{tpu_custom_call.1} parent=1 // pred_check
      _
    $region27: #{tpu_custom_call.1} parent=1 // pred_check_branch
      %706 = sbr.rel (0) target = $region29
    $region28: #{tpu_custom_call.1} parent=1 // pred_region
      %707 = dma.done [#allocation5], 1024
    $region29: #{tpu_custom_call.1} parent=1 // pred_fallthru
      _
    %708 = vsyncpa [#allocation4], 1
    %709 = vsyncpa [#allocation7], 1
    %710 = vsyncpa [#allocation5], 1

</llo_original>
